<compile_context>
chip_gen: v5e
topology: v5e:2x2
jax: 0.10.0
libtpu: 0.0.40
codegen_flags: <defaults>
</compile_context>

<pallas_src>
import jax
import jax.numpy as jnp
from jax.experimental import pallas as pl
from jax.experimental.pallas import tpu as pltpu


def valnet_kernel(x_ref, w_ref, b_ref, o_ref):
    """x_ref: (tb, N) VMEM; w_ref: (1, N) VMEM; b_ref: (1, 1) f32 SMEM.

    o_ref is either (tb, 1)    -- single-tile path, direct (B, 1) store, or
                    (1, 1, tb) -- batched path, lane-dense store (batch on lanes).
    """
    x = x_ref[...].astype(jnp.float32)   # upcast (if bf16) inside the kernel only
    w = w_ref[...].astype(jnp.float32)
    prod = x * w                         # VPU elementwise; w broadcast over rows
    bias = b_ref[0, 0]                   # scalar read from SMEM

    if len(o_ref.shape) == 3:
        # Lane-dense output: batch results along the lane axis, one row store
        # per grid step (no skinny masked column store).
        row = jnp.sum(prod, axis=-1)                     # (tb,) lane reduction
        vals = jax.nn.sigmoid(row + bias)                # EUP
        o_ref[...] = vals.reshape(o_ref.shape).astype(o_ref.dtype)
    else:
        logits = jnp.sum(prod, axis=-1, keepdims=True) + bias   # (tb, 1)
        o_ref[...] = jax.nn.sigmoid(logits).astype(o_ref.dtype)


def prepare_params(w, b):
    """One-time parameter preprocessing (hoisted out of the forward path)."""
    w2 = jnp.asarray(w).reshape(1, -1)                    # (1, N)
    b_sc = jnp.asarray(b, dtype=jnp.float32).reshape(1, 1)  # (1, 1) SMEM scalar
    return w2, b_sc


def valnet_simp_forward(x, w2, b_sc, *, max_batch_tile=64, out_dtype=jnp.float32):
    """sigmoid(x @ w2.T + b):  x (B, N), w2 (1, N), b_sc (1, 1)  ->  (B, 1)."""
    B, N = x.shape
    assert w2.shape == (1, N)
    assert b_sc.shape == (1, 1)

    smem_spec = pl.BlockSpec(memory_space=pltpu.MemorySpace.SMEM)
    cparams = pltpu.CompilerParams(
        dimension_semantics=("parallel",),
        vmem_limit_bytes=32 * 1024 * 1024,   # explicit; safe on v5e/v6e/v7x
    )

    if B <= max_batch_tile:
        # Single grid step; output written directly as (B, 1): no wrapper pad,
        # reshape or slice -> exactly one XLA op per forward call.
        return pl.pallas_call(
            valnet_kernel,
            out_shape=jax.ShapeDtypeStruct((B, 1), out_dtype),
            grid_spec=pltpu.PrefetchScalarGridSpec(
                num_scalar_prefetch=0,
                grid=(1,),
                in_specs=[
                    pl.BlockSpec((B, N), lambda i: (0, 0)),   # full ragged N block
                    pl.BlockSpec((1, N), lambda i: (0, 0)),
                    smem_spec,
                ],
                out_specs=pl.BlockSpec((B, 1), lambda i: (0, 0)),
            ),
            compiler_params=cparams,
        )(x, w2, b_sc)

    # Batched path: tile the batch into >=2 "parallel" steps (megacore on v7x).
    tb = max_batch_tile
    assert tb % 8 == 0
    num_tiles = pl.cdiv(B, tb)   # last x block may read past row B: those rows
                                 # produce garbage outputs that are sliced off.
    out = pl.pallas_call(
        valnet_kernel,
        out_shape=jax.ShapeDtypeStruct((num_tiles, 1, tb), out_dtype),
        grid_spec=pltpu.PrefetchScalarGridSpec(
            num_scalar_prefetch=0,
            grid=(num_tiles,),
            in_specs=[
                pl.BlockSpec((tb, N), lambda i: (i, 0)),
                pl.BlockSpec((1, N), lambda i: (0, 0)),
                smem_spec,
            ],
            out_specs=pl.BlockSpec((1, 1, tb), lambda i: (i, 0, 0)),  # lane-dense
        ),
        compiler_params=cparams,
    )(x, w2, b_sc)

    flat = out.reshape(num_tiles * tb, 1)
    return flat if num_tiles * tb == B else flat[:B]


if __name__ == "__main__":
    N = 11206   # module default: fc1 = nn.Linear(11206, 1)

    key = jax.random.PRNGKey(0)
    kx, kw, kb, kx2 = jax.random.split(key, 4)

    # Deterministic "Kaiming-uniform-ish" init, same shapes as nn.Linear(N, 1).
    bound = 1.0 / (N ** 0.5)
    w = jax.random.uniform(kw, (1, N), minval=-bound, maxval=bound, dtype=jnp.float32)
    b = jax.random.uniform(kb, (1,), minval=-bound, maxval=bound, dtype=jnp.float32)
    w2, b_sc = prepare_params(w, b)          # hoisted out of the forward path

    fwd = jax.jit(valnet_simp_forward)

    def reference(xf):
        xf = xf.astype(jnp.float32)
        return jax.nn.sigmoid(jnp.sum(xf * w, axis=-1, keepdims=True) + b[None, :])

    # 1) Production-like small batch (B=2), f32: single-tile path.
    x = jax.random.normal(kx, (2, N), dtype=jnp.float32)
    out = jax.block_until_ready(fwd(x, w2, b_sc))
    assert out.shape == (2, 1)
    assert jnp.allclose(out, reference(x), atol=1e-5), "small-batch path mismatch"

    # 2) Batched path: multi-tile, lane-dense output, ragged batch edge (200 % 64 != 0).
    xb = jax.random.normal(kx2, (200, N), dtype=jnp.float32)
    outb = jax.block_until_ready(fwd(xb, w2, b_sc))
    assert outb.shape == (200, 1)
    assert jnp.allclose(outb, reference(xb), atol=1e-5), "batched path mismatch"

    # 3) bf16 activations (halves HBM traffic at large B); f32 accumulation in-kernel.
    xh = x.astype(jnp.bfloat16)
    outh = jax.block_until_ready(fwd(xh, w2, b_sc))
    assert outh.shape == (2, 1)
    assert jnp.allclose(outh, reference(xh), atol=1e-4), "bf16 path mismatch"

    print("KERNEL_OK")
</pallas_src>

<mosaic_0001>
module attributes {stable_mosaic.version = 11 : i64} {
  func.func @valnet_kernel(%arg0: i32, %arg1: memref<2x11206xf32, #tpu.memory_space<vmem>>, %arg2: memref<1x11206xf32, #tpu.memory_space<vmem>>, %arg3: memref<1x1xf32, #tpu.memory_space<smem>>, %arg4: memref<2x1xf32, #tpu.memory_space<vmem>>) attributes {dimension_semantics = [#tpu.dimension_semantics<parallel>], iteration_bounds = array<i64: 1>, scalar_prefetch = 0 : i64, scratch_operands = 0 : i64, tpu.core_type = #tpu.core_type<tc>, window_params = [{pipeline_mode = #tpu.pipeline_mode<synchronous>, transform_indices = @transform_0, window_bounds = array<i64: 2, 11206>}, {pipeline_mode = #tpu.pipeline_mode<synchronous>, transform_indices = @transform_1, window_bounds = array<i64: 1, 11206>}, {transform_indices = @transform_2, window_bounds = array<i64: 1, 1>}, {pipeline_mode = #tpu.pipeline_mode<synchronous>, transform_indices = @transform_3, window_bounds = array<i64: 2, 1>}]} {
    %c0 = arith.constant 0 : index
    %c0_0 = arith.constant 0 : index
    %0 = vector.load %arg1[%c0, %c0_0] : memref<2x11206xf32, #tpu.memory_space<vmem>>, vector<2x11206xf32>
    %c0_1 = arith.constant 0 : index
    %c0_2 = arith.constant 0 : index
    %1 = vector.load %arg2[%c0_1, %c0_2] : memref<1x11206xf32, #tpu.memory_space<vmem>>, vector<1x11206xf32>
    %2 = vector.broadcast %1 : vector<1x11206xf32> to vector<2x11206xf32>
    %3 = arith.mulf %0, %2 : vector<2x11206xf32>
    %c0_3 = arith.constant 0 : index
    %c0_4 = arith.constant 0 : index
    %4 = memref.load %arg3[%c0_3, %c0_4] : memref<1x1xf32, #tpu.memory_space<smem>>
    %cst = arith.constant dense<0.000000e+00> : vector<2xf32>
    %5 = vector.multi_reduction <add>, %3, %cst [1] : vector<2x11206xf32> to vector<2xf32>
    %6 = vector.shape_cast %5 : vector<2xf32> to vector<2x1xf32>
    %7 = vector.broadcast %4 : f32 to vector<2x1xf32>
    %8 = arith.addf %6, %7 : vector<2x1xf32>
    %9 = arith.negf %8 : vector<2x1xf32>
    %10 = math.exp %9 : vector<2x1xf32>
    %cst_5 = arith.constant 1.000000e+00 : f32
    %11 = vector.broadcast %cst_5 : f32 to vector<2x1xf32>
    %12 = arith.addf %11, %10 : vector<2x1xf32>
    %13 = arith.divf %11, %12 : vector<2x1xf32>
    %c0_6 = arith.constant 0 : index
    %c0_7 = arith.constant 0 : index
    %14 = vector.load %arg4[%c0_6, %c0_7] : memref<2x1xf32, #tpu.memory_space<vmem>>, vector<2x1xf32>
    tpu.vector_store %arg4[%c0_6, %c0_7], %13 {strides = array<i32>} : memref<2x1xf32, #tpu.memory_space<vmem>>, vector<2x1xf32>,
    return
  }
  func.func @transform_0(%arg0: i32) -> (i32, i32) {
    %c0_i32 = arith.constant 0 : i32
    %c0_i32_0 = arith.constant 0 : i32
    %c0_i32_1 = arith.constant 0 : i32
    return %c0_i32, %c0_i32_0 : i32, i32
  }
  func.func @transform_1(%arg0: i32) -> (i32, i32) {
    %c0_i32 = arith.constant 0 : i32
    %c0_i32_0 = arith.constant 0 : i32
    %c0_i32_1 = arith.constant 0 : i32
    return %c0_i32, %c0_i32_0 : i32, i32
  }
  func.func @transform_2(%arg0: i32) -> (i32, i32) {
    %c0_i32 = arith.constant 0 : i32
    %c0_i32_0 = arith.constant 0 : i32
    %c0_i32_1 = arith.constant 0 : i32
    return %c0_i32, %c0_i32_0 : i32, i32
  }
  func.func @transform_3(%arg0: i32) -> (i32, i32) {
    %c0_i32 = arith.constant 0 : i32
    %c0_i32_0 = arith.constant 0 : i32
    %c0_i32_1 = arith.constant 0 : i32
    return %c0_i32, %c0_i32_0 : i32, i32
  }
}

</mosaic_0001>

<llo_original>
// kernel: valnet_simp_forward.1
$region0: #{valnet_simp_forward.1}
  #allocation0 [shape = 'u32[]', space=smem, size = 0x4, offset = 0x4, fixed_abs, tag = 'smem constant byte address 0x4 - core index']
  #allocation1 [shape = 'u32[72,128]{1,0:T(1,128)}', space=vmem, size = 0x9000, scoped, tag = 'internal scratch']
  #allocation2 [shape = 'f32[1,1]{1,0:T(1,128)S(6)}', space=smem, size = 0x200, scoped, tag = 'scoped memory for valnet_simp_forward.1']
  %s0 = inlined_call_operand.hbm [shape: f32[2,11206], index: 0, kind: input, shape index: {}]
  %s1 = inlined_call_operand.hbm [shape: f32[1,11206], index: 1, kind: input, shape index: {}]
  %s2 = inlined_call_operand.<no memory space> [shape: f32[1,1], index: 2, kind: input, shape index: {}]
  %s3 = inlined_call_operand.vmem [shape: f32[2,1], index: 3, kind: output, shape index: {}]
  %s4 = sld [smem:[#allocation0]]
  $region30: #{valnet_simp_forward.1} parent=0
    _
  %s6 = ssub.s32 1, %s4
  %s7 = scalar_select 0, %s6, %s4
  %8 = sst [smem:[#allocation2]] %s2
  $region1: #{valnet_simp_forward.1} parent=0
    #allocation3 [shape = 'u8[90112]{0}', space=vmem, size = 0x16000, scoped, tag = 'input window, operand 0, single buffered']
    #allocation4 [shape = 's32[1]{0}', space=sflag, size = 0x4, scoped, tag = 'scoped memory for valnet_simp_forward.1']
    #allocation5 [shape = 'u8[45056]{0}', space=vmem, size = 0xb000, scoped, tag = 'input window, operand 1, single buffered']
    #allocation6 [shape = 's32[1]{0}', space=sflag, size = 0x4, scoped, tag = 'scoped memory for valnet_simp_forward.1']
    %9 = vsyncpa [#allocation4], 0
    %10 = vsyncpa [#allocation6], 0
    // Predicated region
    $region2: #{valnet_simp_forward.1} parent=1 // pred_check
      _
    $region3: #{valnet_simp_forward.1} parent=1 // pred_check_branch
      %12 = sbr.rel (0) target = $region5
    $region4: #{valnet_simp_forward.1} parent=1 // pred_region
      %14 = vsyncadd [#allocation4], 0
      %s16 = sshll.u32 %s0, 4
      %s17 = int_to_ptr.hbm [resolvable:$true] %s16
      %s18 = sshll.u32 [#allocation3], 4
      %s19 = int_to_ptr.vmem [resolvable:$true] %s18
      %21 = dma.hbm_to_vmem [thread:$0]  %s17, 2816, %s19, [#allocation4]
    $region5: #{valnet_simp_forward.1} parent=1 // pred_fallthru
      _
    // Predicated region
    $region6: #{valnet_simp_forward.1} parent=1 // pred_check
      _
    $region7: #{valnet_simp_forward.1} parent=1 // pred_check_branch
      %23 = sbr.rel (0) target = $region9
    $region8: #{valnet_simp_forward.1} parent=1 // pred_region
      %25 = vsyncadd [#allocation6], 0
      %s27 = sshll.u32 %s1, 4
      %s28 = int_to_ptr.hbm [resolvable:$true] %s27
      %s29 = sshll.u32 [#allocation5], 4
      %s30 = int_to_ptr.vmem [resolvable:$true] %s29
      %32 = dma.hbm_to_vmem [thread:$0]  %s28, 1408, %s30, [#allocation6]
    $region9: #{valnet_simp_forward.1} parent=1 // pred_fallthru
      _
    // Predicated region
    $region10: #{valnet_simp_forward.1} parent=1 // pred_check
      _
    $region11: #{valnet_simp_forward.1} parent=1 // pred_check_branch
      %34 = sbr.rel (0) target = $region13
    $region12: #{valnet_simp_forward.1} parent=1 // pred_region
      _
    $region13: #{valnet_simp_forward.1} parent=1 // pred_fallthru
      _
    // Predicated region
    $region14: #{valnet_simp_forward.1} parent=1 // pred_check
      _
    $region15: #{valnet_simp_forward.1} parent=1 // pred_check_branch
      %36 = sbr.rel (0) target = $region17
    $region16: #{valnet_simp_forward.1} parent=1 // pred_region
      %38 = dma.done [#allocation4], 2816
    $region17: #{valnet_simp_forward.1} parent=1 // pred_fallthru
      _
    // Predicated region
    $region18: #{valnet_simp_forward.1} parent=1 // pred_check
      _
    $region19: #{valnet_simp_forward.1} parent=1 // pred_check_branch
      %40 = sbr.rel (0) target = $region21
    $region20: #{valnet_simp_forward.1} parent=1 // pred_region
      %42 = dma.done [#allocation6], 1408
    $region21: #{valnet_simp_forward.1} parent=1 // pred_fallthru
      _
    %v43 = vld [vmem:[#allocation3] sm:$0xff]
    %v44 = vld [vmem:[#allocation3 + $0x8] sm:$0xff]
    %v45 = vld [vmem:[#allocation3 + $0x10] sm:$0xff]
    %v46 = vld [vmem:[#allocation3 + $0x18] sm:$0xff]
    %v47 = vld [vmem:[#allocation3 + $0x20] sm:$0xff]
    %v48 = vld [vmem:[#allocation3 + $0x28] sm:$0xff]
    %v49 = vld [vmem:[#allocation3 + $0x30] sm:$0xff]
    %v50 = vld [vmem:[#allocation3 + $0x38] sm:$0xff]
    %v51 = vld [vmem:[#allocation3 + $0x40] sm:$0xff]
    %v52 = vld [vmem:[#allocation3 + $0x48] sm:$0xff]
    %v53 = vld [vmem:[#allocation3 + $0x50] sm:$0xff]
    %v54 = vld [vmem:[#allocation3 + $0x58] sm:$0xff]
    %v55 = vld [vmem:[#allocation3 + $0x60] sm:$0xff]
    %v56 = vld [vmem:[#allocation3 + $0x68] sm:$0xff]
    %v57 = vld [vmem:[#allocation3 + $0x70] sm:$0xff]
    %v58 = vld [vmem:[#allocation3 + $0x78] sm:$0xff]
    %v59 = vld [vmem:[#allocation3 + $0x80] sm:$0xff]
    %v60 = vld [vmem:[#allocation3 + $0x88] sm:$0xff]
    %v61 = vld [vmem:[#allocation3 + $0x90] sm:$0xff]
    %v62 = vld [vmem:[#allocation3 + $0x98] sm:$0xff]
    %v63 = vld [vmem:[#allocation3 + $0xa0] sm:$0xff]
    %v64 = vld [vmem:[#allocation3 + $0xa8] sm:$0xff]
    %v65 = vld [vmem:[#allocation5] sm:$0xff]
    %v66 = vld [vmem:[#allocation5 + $0x8] sm:$0xff]
    %v67 = vld [vmem:[#allocation5 + $0x10] sm:$0xff]
    %v68 = vld [vmem:[#allocation5 + $0x18] sm:$0xff]
    %v69 = vld [vmem:[#allocation5 + $0x20] sm:$0xff]
    %v70 = vld [vmem:[#allocation5 + $0x28] sm:$0xff]
    %v71 = vld [vmem:[#allocation5 + $0x30] sm:$0xff]
    %v72 = vld [vmem:[#allocation5 + $0x38] sm:$0xff]
    %v73 = vld [vmem:[#allocation5 + $0x40] sm:$0xff]
    %v74 = vld [vmem:[#allocation5 + $0x48] sm:$0xff]
    %v75 = vld [vmem:[#allocation5 + $0x50] sm:$0xff]
    %v87 = vperm.slane %v65, 0
    %v88 = vperm.slane %v65, 1
    %v89 = vperm.slane %v65, 2
    %v90 = vperm.slane %v65, 3
    %v91 = vperm.slane %v65, 4
    %v92 = vperm.slane %v65, 5
    %v93 = vperm.slane %v65, 6
    %v94 = vperm.slane %v65, 7
    %v95 = vperm.slane %v66, 0
    %v96 = vperm.slane %v66, 1
    %v97 = vperm.slane %v66, 2
    %v98 = vperm.slane %v66, 3
    %v99 = vperm.slane %v66, 4
    %v100 = vperm.slane %v66, 5
    %v101 = vperm.slane %v66, 6
    %v102 = vperm.slane %v66, 7
    %v103 = vperm.slane %v67, 0
    %v104 = vperm.slane %v67, 1
    %v105 = vperm.slane %v67, 2
    %v106 = vperm.slane %v67, 3
    %v107 = vperm.slane %v67, 4
    %v108 = vperm.slane %v67, 5
    %v109 = vperm.slane %v67, 6
    %v110 = vperm.slane %v67, 7
    %v111 = vperm.slane %v68, 0
    %v112 = vperm.slane %v68, 1
    %v113 = vperm.slane %v68, 2
    %v114 = vperm.slane %v68, 3
    %v115 = vperm.slane %v68, 4
    %v116 = vperm.slane %v68, 5
    %v117 = vperm.slane %v68, 6
    %v118 = vperm.slane %v68, 7
    %v119 = vperm.slane %v69, 0
    %v120 = vperm.slane %v69, 1
    %v121 = vperm.slane %v69, 2
    %v122 = vperm.slane %v69, 3
    %v123 = vperm.slane %v69, 4
    %v124 = vperm.slane %v69, 5
    %v125 = vperm.slane %v69, 6
    %v126 = vperm.slane %v69, 7
    %v127 = vperm.slane %v70, 0
    %v128 = vperm.slane %v70, 1
    %v129 = vperm.slane %v70, 2
    %v130 = vperm.slane %v70, 3
    %v131 = vperm.slane %v70, 4
    %v132 = vperm.slane %v70, 5
    %v133 = vperm.slane %v70, 6
    %v134 = vperm.slane %v70, 7
    %v135 = vperm.slane %v71, 0
    %v136 = vperm.slane %v71, 1
    %v137 = vperm.slane %v71, 2
    %v138 = vperm.slane %v71, 3
    %v139 = vperm.slane %v71, 4
    %v140 = vperm.slane %v71, 5
    %v141 = vperm.slane %v71, 6
    %v142 = vperm.slane %v71, 7
    %v143 = vperm.slane %v72, 0
    %v144 = vperm.slane %v72, 1
    %v145 = vperm.slane %v72, 2
    %v146 = vperm.slane %v72, 3
    %v147 = vperm.slane %v72, 4
    %v148 = vperm.slane %v72, 5
    %v149 = vperm.slane %v72, 6
    %v150 = vperm.slane %v72, 7
    %v151 = vperm.slane %v73, 0
    %v152 = vperm.slane %v73, 1
    %v153 = vperm.slane %v73, 2
    %v154 = vperm.slane %v73, 3
    %v155 = vperm.slane %v73, 4
    %v156 = vperm.slane %v73, 5
    %v157 = vperm.slane %v73, 6
    %v158 = vperm.slane %v73, 7
    %v159 = vperm.slane %v74, 0
    %v160 = vperm.slane %v74, 1
    %v161 = vperm.slane %v74, 2
    %v162 = vperm.slane %v74, 3
    %v163 = vperm.slane %v74, 4
    %v164 = vperm.slane %v74, 5
    %v165 = vperm.slane %v74, 6
    %v166 = vperm.slane %v74, 7
    %v167 = vperm.slane %v75, 0
    %v168 = vperm.slane %v75, 1
    %v169 = vperm.slane %v75, 2
    %v170 = vperm.slane %v75, 3
    %v171 = vperm.slane %v75, 4
    %v172 = vperm.slane %v75, 5
    %v173 = vperm.slane %v75, 6
    %v174 = vperm.slane %v75, 7
    %v175 = vrot.slane %v88, 6
    %v176 = vrot.slane %v89, 4
    %v177 = vrot.slane %v90, 2
    %v178 = vrot.slane %v92, 6
    %v179 = vrot.slane %v93, 4
    %v180 = vrot.slane %v94, 2
    %v181 = vrot.slane %v96, 6
    %v182 = vrot.slane %v97, 4
    %v183 = vrot.slane %v98, 2
    %v184 = vrot.slane %v100, 6
    %v185 = vrot.slane %v101, 4
    %v186 = vrot.slane %v102, 2
    %v187 = vrot.slane %v104, 6
    %v188 = vrot.slane %v105, 4
    %v189 = vrot.slane %v106, 2
    %v190 = vrot.slane %v108, 6
    %v191 = vrot.slane %v109, 4
    %v192 = vrot.slane %v110, 2
    %v193 = vrot.slane %v112, 6
    %v194 = vrot.slane %v113, 4
    %v195 = vrot.slane %v114, 2
    %v196 = vrot.slane %v116, 6
    %v197 = vrot.slane %v117, 4
    %v198 = vrot.slane %v118, 2
    %v199 = vrot.slane %v120, 6
    %v200 = vrot.slane %v121, 4
    %v201 = vrot.slane %v122, 2
    %v202 = vrot.slane %v124, 6
    %v203 = vrot.slane %v125, 4
    %v204 = vrot.slane %v126, 2
    %v205 = vrot.slane %v128, 6
    %v206 = vrot.slane %v129, 4
    %v207 = vrot.slane %v130, 2
    %v208 = vrot.slane %v132, 6
    %v209 = vrot.slane %v133, 4
    %v210 = vrot.slane %v134, 2
    %v211 = vrot.slane %v136, 6
    %v212 = vrot.slane %v137, 4
    %v213 = vrot.slane %v138, 2
    %v214 = vrot.slane %v140, 6
    %v215 = vrot.slane %v141, 4
    %v216 = vrot.slane %v142, 2
    %v217 = vrot.slane %v144, 6
    %v218 = vrot.slane %v145, 4
    %v219 = vrot.slane %v146, 2
    %v220 = vrot.slane %v148, 6
    %v221 = vrot.slane %v149, 4
    %v222 = vrot.slane %v150, 2
    %v223 = vrot.slane %v152, 6
    %v224 = vrot.slane %v153, 4
    %v225 = vrot.slane %v154, 2
    %v226 = vrot.slane %v156, 6
    %v227 = vrot.slane %v157, 4
    %v228 = vrot.slane %v158, 2
    %v229 = vrot.slane %v160, 6
    %v230 = vrot.slane %v161, 4
    %v231 = vrot.slane %v162, 2
    %v232 = vrot.slane %v164, 6
    %v233 = vrot.slane %v165, 4
    %v234 = vrot.slane %v166, 2
    %v235 = vrot.slane %v168, 6
    %v236 = vrot.slane %v169, 4
    %v237 = vrot.slane %v170, 2
    %v238 = vrot.slane %v172, 6
    %v239 = vrot.slane %v173, 4
    %v240 = vrot.slane %v174, 2
    %vm241 = vcmask 1041408
    %v242 = vsel %vm241, %v87, %v175
    %vm243 = vcmask 1045508
    %v244 = vsel %vm243, %v176, %v177
    %vm245 = vcmask 1043456
    %v246 = vsel %vm245, %v242, %v244
    %v247 = vsel %vm241, %v91, %v178
    %v248 = vsel %vm243, %v179, %v180
    %v249 = vsel %vm245, %v247, %v248
    %v250 = vsel %vm241, %v95, %v181
    %v251 = vsel %vm243, %v182, %v183
    %v252 = vsel %vm245, %v250, %v251
    %v253 = vsel %vm241, %v99, %v184
    %v254 = vsel %vm243, %v185, %v186
    %v255 = vsel %vm245, %v253, %v254
    %v256 = vsel %vm241, %v103, %v187
    %v257 = vsel %vm243, %v188, %v189
    %v258 = vsel %vm245, %v256, %v257
    %v259 = vsel %vm241, %v107, %v190
    %v260 = vsel %vm243, %v191, %v192
    %v261 = vsel %vm245, %v259, %v260
    %v262 = vsel %vm241, %v111, %v193
    %v263 = vsel %vm243, %v194, %v195
    %v264 = vsel %vm245, %v262, %v263
    %v265 = vsel %vm241, %v115, %v196
    %v266 = vsel %vm243, %v197, %v198
    %v267 = vsel %vm245, %v265, %v266
    %v268 = vsel %vm241, %v119, %v199
    %v269 = vsel %vm243, %v200, %v201
    %v270 = vsel %vm245, %v268, %v269
    %v271 = vsel %vm241, %v123, %v202
    %v272 = vsel %vm243, %v203, %v204
    %v273 = vsel %vm245, %v271, %v272
    %v274 = vsel %vm241, %v127, %v205
    %v275 = vsel %vm243, %v206, %v207
    %v276 = vsel %vm245, %v274, %v275
    %v277 = vsel %vm241, %v131, %v208
    %v278 = vsel %vm243, %v209, %v210
    %v279 = vsel %vm245, %v277, %v278
    %v280 = vsel %vm241, %v135, %v211
    %v281 = vsel %vm243, %v212, %v213
    %v282 = vsel %vm245, %v280, %v281
    %v283 = vsel %vm241, %v139, %v214
    %v284 = vsel %vm243, %v215, %v216
    %v285 = vsel %vm245, %v283, %v284
    %v286 = vsel %vm241, %v143, %v217
    %v287 = vsel %vm243, %v218, %v219
    %v288 = vsel %vm245, %v286, %v287
    %v289 = vsel %vm241, %v147, %v220
    %v290 = vsel %vm243, %v221, %v222
    %v291 = vsel %vm245, %v289, %v290
    %v292 = vsel %vm241, %v151, %v223
    %v293 = vsel %vm243, %v224, %v225
    %v294 = vsel %vm245, %v292, %v293
    %v295 = vsel %vm241, %v155, %v226
    %v296 = vsel %vm243, %v227, %v228
    %v297 = vsel %vm245, %v295, %v296
    %v298 = vsel %vm241, %v159, %v229
    %v299 = vsel %vm243, %v230, %v231
    %v300 = vsel %vm245, %v298, %v299
    %v301 = vsel %vm241, %v163, %v232
    %v302 = vsel %vm243, %v233, %v234
    %v303 = vsel %vm245, %v301, %v302
    %v304 = vsel %vm241, %v167, %v235
    %v305 = vsel %vm243, %v236, %v237
    %v306 = vsel %vm245, %v304, %v305
    %v307 = vsel %vm241, %v171, %v238
    %v308 = vsel %vm243, %v239, %v240
    %v309 = vsel %vm245, %v307, %v308
    %v332 = vmul.f32 %v43, %v246
    %v333 = vmul.f32 %v44, %v249
    %v334 = vmul.f32 %v45, %v252
    %v335 = vmul.f32 %v46, %v255
    %v336 = vmul.f32 %v47, %v258
    %v337 = vmul.f32 %v48, %v261
    %v338 = vmul.f32 %v49, %v264
    %v339 = vmul.f32 %v50, %v267
    %v340 = vmul.f32 %v51, %v270
    %v341 = vmul.f32 %v52, %v273
    %v342 = vmul.f32 %v53, %v276
    %v343 = vmul.f32 %v54, %v279
    %v344 = vmul.f32 %v55, %v282
    %v345 = vmul.f32 %v56, %v285
    %v346 = vmul.f32 %v57, %v288
    %v347 = vmul.f32 %v58, %v291
    %v348 = vmul.f32 %v59, %v294
    %v349 = vmul.f32 %v60, %v297
    %v350 = vmul.f32 %v61, %v300
    %v351 = vmul.f32 %v62, %v303
    %v352 = vmul.f32 %v63, %v306
    %v353 = vmul.f32 %v64, %v309
    %s354 = sld [smem:[#allocation2]]
    %377 = vst [vmem:[#allocation1] ss:$4 sm:$0xff] %v332
    %s378 = scalar_lea.vmem [#allocation1], 32
    %379 = vst [vmem:[%s378] ss:$4 sm:$0xff] %v333
    %v380 = vld.sshfl [vmem:[#allocation1] sm:$0xff pattern:$0x73625140]
    %v381 = vld.sshfl [vmem:[#allocation1 + $0x8] sm:$0xff pattern:$0x73625140]
    %v382 = vld.sshfl [vmem:[#allocation1 + $0x10] sm:$0xff pattern:$0x73625140]
    %v383 = vld.sshfl [vmem:[#allocation1 + $0x18] sm:$0xff pattern:$0x73625140]
    %v384 = vld.sshfl [vmem:[#allocation1 + $0x20] sm:$0xff pattern:$0x73625140]
    %v385 = vld.sshfl [vmem:[#allocation1 + $0x28] sm:$0xff pattern:$0x73625140]
    %v386 = vld.sshfl [vmem:[#allocation1 + $0x30] sm:$0xff pattern:$0x73625140]
    %v387 = vld.sshfl [vmem:[#allocation1 + $0x38] sm:$0xff pattern:$0x73625140]
    %388 = vst [vmem:[#allocation1] ss:$4 sm:$0xff] %v334
    %389 = vst [vmem:[%s378] ss:$4 sm:$0xff] %v335
    %v390 = vld.sshfl [vmem:[#allocation1] sm:$0xff pattern:$0x73625140]
    %v391 = vld.sshfl [vmem:[#allocation1 + $0x8] sm:$0xff pattern:$0x73625140]
    %v392 = vld.sshfl [vmem:[#allocation1 + $0x10] sm:$0xff pattern:$0x73625140]
    %v393 = vld.sshfl [vmem:[#allocation1 + $0x18] sm:$0xff pattern:$0x73625140]
    %v394 = vld.sshfl [vmem:[#allocation1 + $0x20] sm:$0xff pattern:$0x73625140]
    %v395 = vld.sshfl [vmem:[#allocation1 + $0x28] sm:$0xff pattern:$0x73625140]
    %v396 = vld.sshfl [vmem:[#allocation1 + $0x30] sm:$0xff pattern:$0x73625140]
    %v397 = vld.sshfl [vmem:[#allocation1 + $0x38] sm:$0xff pattern:$0x73625140]
    %398 = vst [vmem:[#allocation1] ss:$4 sm:$0xff] %v336
    %399 = vst [vmem:[%s378] ss:$4 sm:$0xff] %v337
    %v400 = vld.sshfl [vmem:[#allocation1] sm:$0xff pattern:$0x73625140]
    %v401 = vld.sshfl [vmem:[#allocation1 + $0x8] sm:$0xff pattern:$0x73625140]
    %v402 = vld.sshfl [vmem:[#allocation1 + $0x10] sm:$0xff pattern:$0x73625140]
    %v403 = vld.sshfl [vmem:[#allocation1 + $0x18] sm:$0xff pattern:$0x73625140]
    %v404 = vld.sshfl [vmem:[#allocation1 + $0x20] sm:$0xff pattern:$0x73625140]
    %v405 = vld.sshfl [vmem:[#allocation1 + $0x28] sm:$0xff pattern:$0x73625140]
    %v406 = vld.sshfl [vmem:[#allocation1 + $0x30] sm:$0xff pattern:$0x73625140]
    %v407 = vld.sshfl [vmem:[#allocation1 + $0x38] sm:$0xff pattern:$0x73625140]
    %408 = vst [vmem:[#allocation1] ss:$4 sm:$0xff] %v338
    %409 = vst [vmem:[%s378] ss:$4 sm:$0xff] %v339
    %v410 = vld.sshfl [vmem:[#allocation1] sm:$0xff pattern:$0x73625140]
    %v411 = vld.sshfl [vmem:[#allocation1 + $0x8] sm:$0xff pattern:$0x73625140]
    %v412 = vld.sshfl [vmem:[#allocation1 + $0x10] sm:$0xff pattern:$0x73625140]
    %v413 = vld.sshfl [vmem:[#allocation1 + $0x18] sm:$0xff pattern:$0x73625140]
    %v414 = vld.sshfl [vmem:[#allocation1 + $0x20] sm:$0xff pattern:$0x73625140]
    %v415 = vld.sshfl [vmem:[#allocation1 + $0x28] sm:$0xff pattern:$0x73625140]
    %v416 = vld.sshfl [vmem:[#allocation1 + $0x30] sm:$0xff pattern:$0x73625140]
    %v417 = vld.sshfl [vmem:[#allocation1 + $0x38] sm:$0xff pattern:$0x73625140]
    %418 = vst [vmem:[#allocation1] ss:$4 sm:$0xff] %v340
    %419 = vst [vmem:[%s378] ss:$4 sm:$0xff] %v341
    %v420 = vld.sshfl [vmem:[#allocation1] sm:$0xff pattern:$0x73625140]
    %v421 = vld.sshfl [vmem:[#allocation1 + $0x8] sm:$0xff pattern:$0x73625140]
    %v422 = vld.sshfl [vmem:[#allocation1 + $0x10] sm:$0xff pattern:$0x73625140]
    %v423 = vld.sshfl [vmem:[#allocation1 + $0x18] sm:$0xff pattern:$0x73625140]
    %v424 = vld.sshfl [vmem:[#allocation1 + $0x20] sm:$0xff pattern:$0x73625140]
    %v425 = vld.sshfl [vmem:[#allocation1 + $0x28] sm:$0xff pattern:$0x73625140]
    %v426 = vld.sshfl [vmem:[#allocation1 + $0x30] sm:$0xff pattern:$0x73625140]
    %v427 = vld.sshfl [vmem:[#allocation1 + $0x38] sm:$0xff pattern:$0x73625140]
    %428 = vst [vmem:[#allocation1] ss:$4 sm:$0xff] %v342
    %429 = vst [vmem:[%s378] ss:$4 sm:$0xff] %v343
    %v430 = vld.sshfl [vmem:[#allocation1] sm:$0xff pattern:$0x73625140]
    %v431 = vld.sshfl [vmem:[#allocation1 + $0x8] sm:$0xff pattern:$0x73625140]
    %v432 = vld.sshfl [vmem:[#allocation1 + $0x10] sm:$0xff pattern:$0x73625140]
    %v433 = vld.sshfl [vmem:[#allocation1 + $0x18] sm:$0xff pattern:$0x73625140]
    %v434 = vld.sshfl [vmem:[#allocation1 + $0x20] sm:$0xff pattern:$0x73625140]
    %v435 = vld.sshfl [vmem:[#allocation1 + $0x28] sm:$0xff pattern:$0x73625140]
    %v436 = vld.sshfl [vmem:[#allocation1 + $0x30] sm:$0xff pattern:$0x73625140]
    %v437 = vld.sshfl [vmem:[#allocation1 + $0x38] sm:$0xff pattern:$0x73625140]
    %438 = vst [vmem:[#allocation1] ss:$4 sm:$0xff] %v344
    %439 = vst [vmem:[%s378] ss:$4 sm:$0xff] %v345
    %v440 = vld.sshfl [vmem:[#allocation1] sm:$0xff pattern:$0x73625140]
    %v441 = vld.sshfl [vmem:[#allocation1 + $0x8] sm:$0xff pattern:$0x73625140]
    %v442 = vld.sshfl [vmem:[#allocation1 + $0x10] sm:$0xff pattern:$0x73625140]
    %v443 = vld.sshfl [vmem:[#allocation1 + $0x18] sm:$0xff pattern:$0x73625140]
    %v444 = vld.sshfl [vmem:[#allocation1 + $0x20] sm:$0xff pattern:$0x73625140]
    %v445 = vld.sshfl [vmem:[#allocation1 + $0x28] sm:$0xff pattern:$0x73625140]
    %v446 = vld.sshfl [vmem:[#allocation1 + $0x30] sm:$0xff pattern:$0x73625140]
    %v447 = vld.sshfl [vmem:[#allocation1 + $0x38] sm:$0xff pattern:$0x73625140]
    %448 = vst [vmem:[#allocation1] ss:$4 sm:$0xff] %v346
    %449 = vst [vmem:[%s378] ss:$4 sm:$0xff] %v347
    %v450 = vld.sshfl [vmem:[#allocation1] sm:$0xff pattern:$0x73625140]
    %v451 = vld.sshfl [vmem:[#allocation1 + $0x8] sm:$0xff pattern:$0x73625140]
    %v452 = vld.sshfl [vmem:[#allocation1 + $0x10] sm:$0xff pattern:$0x73625140]
    %v453 = vld.sshfl [vmem:[#allocation1 + $0x18] sm:$0xff pattern:$0x73625140]
    %v454 = vld.sshfl [vmem:[#allocation1 + $0x20] sm:$0xff pattern:$0x73625140]
    %v455 = vld.sshfl [vmem:[#allocation1 + $0x28] sm:$0xff pattern:$0x73625140]
    %v456 = vld.sshfl [vmem:[#allocation1 + $0x30] sm:$0xff pattern:$0x73625140]
    %v457 = vld.sshfl [vmem:[#allocation1 + $0x38] sm:$0xff pattern:$0x73625140]
    %458 = vst [vmem:[#allocation1] ss:$4 sm:$0xff] %v348
    %459 = vst [vmem:[%s378] ss:$4 sm:$0xff] %v349
    %v460 = vld.sshfl [vmem:[#allocation1] sm:$0xff pattern:$0x73625140]
    %v461 = vld.sshfl [vmem:[#allocation1 + $0x8] sm:$0xff pattern:$0x73625140]
    %v462 = vld.sshfl [vmem:[#allocation1 + $0x10] sm:$0xff pattern:$0x73625140]
    %v463 = vld.sshfl [vmem:[#allocation1 + $0x18] sm:$0xff pattern:$0x73625140]
    %v464 = vld.sshfl [vmem:[#allocation1 + $0x20] sm:$0xff pattern:$0x73625140]
    %v465 = vld.sshfl [vmem:[#allocation1 + $0x28] sm:$0xff pattern:$0x73625140]
    %v466 = vld.sshfl [vmem:[#allocation1 + $0x30] sm:$0xff pattern:$0x73625140]
    %v467 = vld.sshfl [vmem:[#allocation1 + $0x38] sm:$0xff pattern:$0x73625140]
    %468 = vst [vmem:[#allocation1] ss:$4 sm:$0xff] %v350
    %469 = vst [vmem:[%s378] ss:$4 sm:$0xff] %v351
    %v470 = vld.sshfl [vmem:[#allocation1] sm:$0xff pattern:$0x73625140]
    %v471 = vld.sshfl [vmem:[#allocation1 + $0x8] sm:$0xff pattern:$0x73625140]
    %v472 = vld.sshfl [vmem:[#allocation1 + $0x10] sm:$0xff pattern:$0x73625140]
    %v473 = vld.sshfl [vmem:[#allocation1 + $0x18] sm:$0xff pattern:$0x73625140]
    %v474 = vld.sshfl [vmem:[#allocation1 + $0x20] sm:$0xff pattern:$0x73625140]
    %v475 = vld.sshfl [vmem:[#allocation1 + $0x28] sm:$0xff pattern:$0x73625140]
    %v476 = vld.sshfl [vmem:[#allocation1 + $0x30] sm:$0xff pattern:$0x73625140]
    %v477 = vld.sshfl [vmem:[#allocation1 + $0x38] sm:$0xff pattern:$0x73625140]
    %478 = vst [vmem:[#allocation1] ss:$4 sm:$0xff] %v352
    %479 = vst [vmem:[%s378] ss:$4 sm:$0xff] %v353
    %v480 = vld.sshfl [vmem:[#allocation1] sm:$0xff pattern:$0x73625140]
    %v481 = vld.sshfl [vmem:[#allocation1 + $0x8] sm:$0xff pattern:$0x73625140]
    %v482 = vld.sshfl [vmem:[#allocation1 + $0x10] sm:$0xff pattern:$0x73625140]
    %v483 = vld.sshfl [vmem:[#allocation1 + $0x18] sm:$0xff pattern:$0x73625140]
    %v484 = vld.sshfl [vmem:[#allocation1 + $0x20] sm:$0xff pattern:$0x73625140]
    %v485 = vld.sshfl [vmem:[#allocation1 + $0x28] sm:$0xff pattern:$0x73625140]
    %v486 = vld.sshfl [vmem:[#allocation1 + $0x30] sm:$0xff pattern:$0x73625140]
    %v487 = vld.sshfl [vmem:[#allocation1 + $0x38] sm:$0xff pattern:$0x73625140]
    %v576 = vsel %vm241, %v380, 0.0
    %v577 = vsel %vm241, %v381, 0.0
    %v578 = vadd.f32 %v576, %v577
    %v579 = vsel %vm241, %v382, 0.0
    %v580 = vadd.f32 %v578, %v579
    %v581 = vsel %vm241, %v383, 0.0
    %v582 = vadd.f32 %v580, %v581
    %v583 = vsel %vm241, %v384, 0.0
    %v584 = vadd.f32 %v582, %v583
    %v585 = vsel %vm241, %v385, 0.0
    %v586 = vadd.f32 %v584, %v585
    %v587 = vsel %vm241, %v386, 0.0
    %v588 = vadd.f32 %v586, %v587
    %v589 = vsel %vm241, %v387, 0.0
    %v590 = vadd.f32 %v588, %v589
    %v591 = vsel %vm241, %v390, 0.0
    %v592 = vadd.f32 %v590, %v591
    %v593 = vsel %vm241, %v391, 0.0
    %v594 = vadd.f32 %v592, %v593
    %v595 = vsel %vm241, %v392, 0.0
    %v596 = vadd.f32 %v594, %v595
    %v597 = vsel %vm241, %v393, 0.0
    %v598 = vadd.f32 %v596, %v597
    %v599 = vsel %vm241, %v394, 0.0
    %v600 = vadd.f32 %v598, %v599
    %v601 = vsel %vm241, %v395, 0.0
    %v602 = vadd.f32 %v600, %v601
    %v603 = vsel %vm241, %v396, 0.0
    %v604 = vadd.f32 %v602, %v603
    %v605 = vsel %vm241, %v397, 0.0
    %v606 = vadd.f32 %v604, %v605
    %v607 = vsel %vm241, %v400, 0.0
    %v608 = vadd.f32 %v606, %v607
    %v609 = vsel %vm241, %v401, 0.0
    %v610 = vadd.f32 %v608, %v609
    %v611 = vsel %vm241, %v402, 0.0
    %v612 = vadd.f32 %v610, %v611
    %v613 = vsel %vm241, %v403, 0.0
    %v614 = vadd.f32 %v612, %v613
    %v615 = vsel %vm241, %v404, 0.0
    %v616 = vadd.f32 %v614, %v615
    %v617 = vsel %vm241, %v405, 0.0
    %v618 = vadd.f32 %v616, %v617
    %v619 = vsel %vm241, %v406, 0.0
    %v620 = vadd.f32 %v618, %v619
    %v621 = vsel %vm241, %v407, 0.0
    %v622 = vadd.f32 %v620, %v621
    %v623 = vsel %vm241, %v410, 0.0
    %v624 = vadd.f32 %v622, %v623
    %v625 = vsel %vm241, %v411, 0.0
    %v626 = vadd.f32 %v624, %v625
    %v627 = vsel %vm241, %v412, 0.0
    %v628 = vadd.f32 %v626, %v627
    %v629 = vsel %vm241, %v413, 0.0
    %v630 = vadd.f32 %v628, %v629
    %v631 = vsel %vm241, %v414, 0.0
    %v632 = vadd.f32 %v630, %v631
    %v633 = vsel %vm241, %v415, 0.0
    %v634 = vadd.f32 %v632, %v633
    %v635 = vsel %vm241, %v416, 0.0
    %v636 = vadd.f32 %v634, %v635
    %v637 = vsel %vm241, %v417, 0.0
    %v638 = vadd.f32 %v636, %v637
    %v639 = vsel %vm241, %v420, 0.0
    %v640 = vadd.f32 %v638, %v639
    %v641 = vsel %vm241, %v421, 0.0
    %v642 = vadd.f32 %v640, %v641
    %v643 = vsel %vm241, %v422, 0.0
    %v644 = vadd.f32 %v642, %v643
    %v645 = vsel %vm241, %v423, 0.0
    %v646 = vadd.f32 %v644, %v645
    %v647 = vsel %vm241, %v424, 0.0
    %v648 = vadd.f32 %v646, %v647
    %v649 = vsel %vm241, %v425, 0.0
    %v650 = vadd.f32 %v648, %v649
    %v651 = vsel %vm241, %v426, 0.0
    %v652 = vadd.f32 %v650, %v651
    %v653 = vsel %vm241, %v427, 0.0
    %v654 = vadd.f32 %v652, %v653
    %v655 = vsel %vm241, %v430, 0.0
    %v656 = vadd.f32 %v654, %v655
    %v657 = vsel %vm241, %v431, 0.0
    %v658 = vadd.f32 %v656, %v657
    %v659 = vsel %vm241, %v432, 0.0
    %v660 = vadd.f32 %v658, %v659
    %v661 = vsel %vm241, %v433, 0.0
    %v662 = vadd.f32 %v660, %v661
    %v663 = vsel %vm241, %v434, 0.0
    %v664 = vadd.f32 %v662, %v663
    %v665 = vsel %vm241, %v435, 0.0
    %v666 = vadd.f32 %v664, %v665
    %v667 = vsel %vm241, %v436, 0.0
    %v668 = vadd.f32 %v666, %v667
    %v669 = vsel %vm241, %v437, 0.0
    %v670 = vadd.f32 %v668, %v669
    %v671 = vsel %vm241, %v440, 0.0
    %v672 = vadd.f32 %v670, %v671
    %v673 = vsel %vm241, %v441, 0.0
    %v674 = vadd.f32 %v672, %v673
    %v675 = vsel %vm241, %v442, 0.0
    %v676 = vadd.f32 %v674, %v675
    %v677 = vsel %vm241, %v443, 0.0
    %v678 = vadd.f32 %v676, %v677
    %v679 = vsel %vm241, %v444, 0.0
    %v680 = vadd.f32 %v678, %v679
    %v681 = vsel %vm241, %v445, 0.0
    %v682 = vadd.f32 %v680, %v681
    %v683 = vsel %vm241, %v446, 0.0
    %v684 = vadd.f32 %v682, %v683
    %v685 = vsel %vm241, %v447, 0.0
    %v686 = vadd.f32 %v684, %v685
    %v687 = vsel %vm241, %v450, 0.0
    %v688 = vadd.f32 %v686, %v687
    %v689 = vsel %vm241, %v451, 0.0
    %v690 = vadd.f32 %v688, %v689
    %v691 = vsel %vm241, %v452, 0.0
    %v692 = vadd.f32 %v690, %v691
    %v693 = vsel %vm241, %v453, 0.0
    %v694 = vadd.f32 %v692, %v693
    %v695 = vsel %vm241, %v454, 0.0
    %v696 = vadd.f32 %v694, %v695
    %v697 = vsel %vm241, %v455, 0.0
    %v698 = vadd.f32 %v696, %v697
    %v699 = vsel %vm241, %v456, 0.0
    %v700 = vadd.f32 %v698, %v699
    %v701 = vsel %vm241, %v457, 0.0
    %v702 = vadd.f32 %v700, %v701
    %v703 = vsel %vm241, %v460, 0.0
    %v704 = vadd.f32 %v702, %v703
    %v705 = vsel %vm241, %v461, 0.0
    %v706 = vadd.f32 %v704, %v705
    %v707 = vsel %vm241, %v462, 0.0
    %v708 = vadd.f32 %v706, %v707
    %v709 = vsel %vm241, %v463, 0.0
    %v710 = vadd.f32 %v708, %v709
    %v711 = vsel %vm241, %v464, 0.0
    %v712 = vadd.f32 %v710, %v711
    %v713 = vsel %vm241, %v465, 0.0
    %v714 = vadd.f32 %v712, %v713
    %v715 = vsel %vm241, %v466, 0.0
    %v716 = vadd.f32 %v714, %v715
    %v717 = vsel %vm241, %v467, 0.0
    %v718 = vadd.f32 %v716, %v717
    %v719 = vsel %vm241, %v470, 0.0
    %v720 = vadd.f32 %v718, %v719
    %v721 = vsel %vm241, %v471, 0.0
    %v722 = vadd.f32 %v720, %v721
    %v723 = vsel %vm241, %v472, 0.0
    %v724 = vadd.f32 %v722, %v723
    %v725 = vsel %vm241, %v473, 0.0
    %v726 = vadd.f32 %v724, %v725
    %v727 = vsel %vm241, %v474, 0.0
    %v728 = vadd.f32 %v726, %v727
    %v729 = vsel %vm241, %v475, 0.0
    %v730 = vadd.f32 %v728, %v729
    %v731 = vsel %vm241, %v476, 0.0
    %v732 = vadd.f32 %v730, %v731
    %v733 = vsel %vm241, %v477, 0.0
    %v734 = vadd.f32 %v732, %v733
    %v735 = vsel %vm241, %v480, 0.0
    %v736 = vadd.f32 %v734, %v735
    %v737 = vsel %vm241, %v481, 0.0
    %v738 = vadd.f32 %v736, %v737
    %v739 = vsel %vm241, %v482, 0.0
    %v740 = vadd.f32 %v738, %v739
    %v741 = vsel %vm241, %v483, 0.0
    %v742 = vadd.f32 %v740, %v741
    %v743 = vsel %vm241, %v484, 0.0
    %v744 = vadd.f32 %v742, %v743
    %v745 = vsel %vm241, %v485, 0.0
    %v746 = vadd.f32 %v744, %v745
    %v747 = vsel %vm241, %v486, 0.0
    %v748 = vadd.f32 %v746, %v747
    %vm749 = vcmask 566272
    %v750 = vsel %vm749, %v487, 0.0
    %v751 = vadd.f32 %v748, %v750
    %752 = vadd.xlane.f32.xlu0 %v751
    %v753 = vpop.xlane.xlu0 %752
    %v754 = vstv %s354
    %v755 = vadd.f32 %v753, %v754
    %v756 = vxor.u32 %v755, 2147483648
    %v757 = vmul.f32 %v756, 1.442695
    %v758 = vpow.pop %v757
    %v759 = vadd.f32 %v758, 1.0
    %v760 = vrcp.pop %v759
    %v761 = vmul.f32 %v759, %v760
    %v762 = vsub.f32 1.0, %v761
    %v763 = vmul.f32 %v760, %v762
    %v764 = vadd.f32 %v760, %v763
    %vm765 = vweird.f32 %v759
    %vm766 = vweird.f32 %v760
    %vm767 = vmor %vm765, %vm766
    %v768 = vsel %vm767, %v760, %v764
    %v769 = vand.u32 2147483647, %v759
    %vm770 = vcmp.eq.f32.partialorder %v769, 8.507059e+37
    %v771 = vand.u32 %v759, 2147483648
    %v772 = vor.u32 1.1754944e-38, %v771
    %v773 = vsel %vm770, %v772, %v768
    %v774 = vmul.f32 1.0, %v773
    %vm775 = vcmask 1024
    %776 = vst.msk [vmem:[%s3] sm:$0x3] %vm775, %v774
    // Predicated region
    $region22: #{valnet_simp_forward.1} parent=1 // pred_check
      _
    $region23: #{valnet_simp_forward.1} parent=1 // pred_check_branch
      %778 = sbr.rel (0) target = $region25
    $region24: #{valnet_simp_forward.1} parent=1 // pred_region
      _
    $region25: #{valnet_simp_forward.1} parent=1 // pred_fallthru
      _
    // Predicated region
    $region26: #{valnet_simp_forward.1} parent=1 // pred_check
      _
    $region27: #{valnet_simp_forward.1} parent=1 // pred_check_branch
      %780 = sbr.rel (0) target = $region29
    $region28: #{valnet_simp_forward.1} parent=1 // pred_region
      _
    $region29: #{valnet_simp_forward.1} parent=1 // pred_fallthru
      _
    %781 = vsyncpa [#allocation4], 1
    %782 = vsyncpa [#allocation6], 1

</llo_original>
